<compile_context>
chip_gen: v6e
topology: v6e:2x2x1
jax: 0.10.0
libtpu: 0.0.40
codegen_flags: <defaults>
</compile_context>

<pallas_src>
import functools
import math

import jax
import jax.numpy as jnp
from jax import lax
from jax.experimental import pallas as pl
from jax.experimental.pallas import tpu as pltpu


_GOLDEN = 0x9E3779B9     # seed mixing constant
_SALT_U = 0x243F6A88     # stream salt: gumbel uniforms
_SALT_R = 0xB7E15162     # stream salt: per-row gate uniforms


def _hash32(x):
    """lowbias32-style avalanche hash on uint32 vectors (VPU-only ops)."""
    x = x ^ (x >> jnp.uint32(16))
    x = x * jnp.uint32(0x7FEB352D)
    x = x ^ (x >> jnp.uint32(15))
    x = x * jnp.uint32(0x846CA68B)
    x = x ^ (x >> jnp.uint32(16))
    return x


def _bits_to_uniform(bits_u32):
    """uint32 bits -> uniform float32 in [0, 1) with 24-bit resolution."""
    b24 = (bits_u32 & jnp.uint32(0x00FFFFFF)).astype(jnp.int32)
    return b24.astype(jnp.float32) * jnp.float32(1.0 / (1 << 24))


def _gumbel_softmax_kernel(seed_ref, logits_ref, out_ref, *,
                           training, random_r, eps, tau):
    x = logits_ref[...].astype(jnp.float32)          # (tt, K)
    tt, k = x.shape

    if training:
        # Counter-based in-kernel RNG: hash(global element index ^ seed-mix).
        seed_u = seed_ref[0].astype(jnp.uint32)
        salt = seed_u * jnp.uint32(_GOLDEN)
        row_base = pl.program_id(0) * tt              # global row offset
        rows_i = lax.broadcasted_iota(jnp.int32, (tt, k), 0) + row_base
        cols_i = lax.broadcasted_iota(jnp.int32, (tt, k), 1)
        rows_u = rows_i.astype(jnp.uint32)
        lin = rows_u * jnp.uint32(k) + cols_i.astype(jnp.uint32)

        # Gumbel noise, full tile.
        u = _bits_to_uniform(_hash32(lin ^ (salt + jnp.uint32(_SALT_U))))
        g = -jnp.log(-jnp.log(u + eps) + eps)

        # Per-row gate, (tt, 1) only (different stream salt).
        r = _bits_to_uniform(
            _hash32(rows_u[:, :1] ^ (salt + jnp.uint32(_SALT_R))))
        gate = (r <= jnp.float32(random_r)).astype(jnp.float32)

        x = x + g * gate

    x = x * jnp.float32(1.0 / tau)
    m = jnp.max(x, axis=-1, keepdims=True)

    # First-argmax one-hot, computed from x (softmax is monotone so the argmax
    # of probs equals the argmax of x); reuses the row max m.
    iota = lax.broadcasted_iota(jnp.int32, x.shape, 1)
    idx = jnp.min(jnp.where(x >= m, iota, k), axis=-1, keepdims=True)
    one_hot = (iota == idx).astype(jnp.float32)

    if training:
        e = jnp.exp(x - m)
        s = jnp.sum(e, axis=-1, keepdims=True)
        probs = e / s                                  # exact divide
        out = (one_hot - probs) + probs                # straight-through value
    else:
        # hard=True eval: (one_hot - probs) + probs == one_hot; skip softmax.
        out = one_hot

    out_ref[...] = out.astype(out_ref.dtype)


def gumbel_softmax(logits, seed, *, training=True, random_r=0.5, eps=1e-20,
                   tau=1.0, hard_r=1.0, hard=True,
                   target_block_bytes=1 << 20):
    """Pallas forward of GumbelSoftmax (hard=True, hard_r>=1.0 path).

    logits: (..., K) array, any float dtype (kept native end-to-end).
    seed:   python int / scalar seeding the in-kernel counter-hash RNG.
    """
    # TODO(synk): only the default hard=True, hard_r>=1.0 branch is implemented.
    del hard_r, hard

    *lead, K = logits.shape
    R = math.prod(lead) if lead else 1
    x2 = logits.reshape(R, K)                          # free row-major collapse
    itemsize = jnp.dtype(logits.dtype).itemsize

    # Row tile sized for ~target_block_bytes of logits per grid step (multiple
    # of 8 sublanes).  ~1 MiB amortizes the ~0.35us/step overhead (~85% of HBM
    # roofline on v6e) while double-buffered in+out plus f32 temporaries stay
    # well under scoped VMEM on v5e/v6e/v7x.
    rows_per_block = max(1, target_block_bytes // (K * itemsize))
    if rows_per_block >= R or R <= 8:
        tt = R
    else:
        tt = max(8, (min(rows_per_block, R) // 8) * 8)
    grid = pl.cdiv(R, tt)                              # ragged last block OK

    seed_arr = jnp.reshape(jnp.asarray(seed, dtype=jnp.int32), (1,))

    kernel = functools.partial(_gumbel_softmax_kernel, training=bool(training),
                               random_r=random_r, eps=eps, tau=tau)

    out = pl.pallas_call(
        kernel,
        out_shape=jax.ShapeDtypeStruct((R, K), logits.dtype),
        grid_spec=pltpu.PrefetchScalarGridSpec(
            num_scalar_prefetch=1,
            grid=(grid,),
            in_specs=[pl.BlockSpec((tt, K), lambda i, seed: (i, 0))],
            out_specs=pl.BlockSpec((tt, K), lambda i, seed: (i, 0)),
        ),
        compiler_params=pltpu.CompilerParams(
            dimension_semantics=("parallel",),
            vmem_limit_bytes=32 * 1024 * 1024),
    )(seed_arr, x2)

    return out.reshape(logits.shape)


if __name__ == "__main__":
    key = jax.random.PRNGKey(0)

    B, T, K = 2, 16, 8  # batch=2, seq=16, num_classes=8
    logits = jax.random.normal(key, (B, T, K), dtype=jnp.float32)

    # Training mode: gumbel noise + row gate generated in-kernel.
    out = gumbel_softmax(logits, seed=0, training=True)
    out = jax.block_until_ready(out)

    assert out.shape == (B, T, K)
    row_sums = jnp.sum(out, axis=-1)
    assert bool(jnp.all(jnp.abs(row_sums - 1.0) < 1e-4))
    assert bool(jnp.all(jnp.max(out, axis=-1) > 0.99))

    # Eval mode: no noise -> hard softmax of logits/tau; argmax must match.
    out_eval = jax.block_until_ready(gumbel_softmax(logits, seed=0,
                                                    training=False))
    assert out_eval.shape == (B, T, K)
    assert bool(jnp.all(jnp.argmax(out_eval, axis=-1)
                        == jnp.argmax(logits, axis=-1)))
    assert bool(jnp.all(jnp.abs(jnp.sum(out_eval, axis=-1) - 1.0) < 1e-4))

    print("KERNEL_OK")
</pallas_src>

<mosaic_0001>
module attributes {stable_mosaic.version = 11 : i64} {
  func.func @_gumbel_softmax_kernel(%arg0: i32, %arg1: memref<1xi32, #tpu.memory_space<smem>>, %arg2: memref<32x8xf32, #tpu.memory_space<vmem>>, %arg3: memref<32x8xf32, #tpu.memory_space<vmem>>) attributes {dimension_semantics = [#tpu.dimension_semantics<parallel>], iteration_bounds = array<i64: 1>, scalar_prefetch = 1 : i64, scratch_operands = 0 : i64, tpu.core_type = #tpu.core_type<tc>, window_params = [{transform_indices = @transform_0, window_bounds = array<i64: 32, 8>}, {transform_indices = @transform_1, window_bounds = array<i64: 32, 8>}]} {
    %c0 = arith.constant 0 : index
    %c0_0 = arith.constant 0 : index
    %0 = vector.load %arg2[%c0, %c0_0] : memref<32x8xf32, #tpu.memory_space<vmem>>, vector<32x8xf32>
    %c0_1 = arith.constant 0 : index
    %1 = memref.load %arg1[%c0_1] : memref<1xi32, #tpu.memory_space<smem>>
    %c-1640531527_i32 = arith.constant -1640531527 : i32
    %2 = arith.muli %1, %c-1640531527_i32 : i32
    %c32_i32 = arith.constant 32 : i32
    %3 = arith.muli %arg0, %c32_i32 : i32
    %4 = tpu.iota {dimensions = array<i32: 0>} : vector<32x8xi32>
    %5 = vector.broadcast %3 : i32 to vector<32x8xi32>
    %6 = arith.addi %4, %5 : vector<32x8xi32>
    %7 = tpu.iota {dimensions = array<i32: 1>} : vector<32x8xi32>
    %c8_i32 = arith.constant 8 : i32
    %8 = vector.broadcast %c8_i32 : i32 to vector<32x8xi32>
    %9 = arith.muli %6, %8 : vector<32x8xi32>
    %10 = arith.addi %9, %7 : vector<32x8xi32>
    %c608135816_i32 = arith.constant 608135816 : i32
    %11 = arith.addi %2, %c608135816_i32 : i32
    %12 = vector.broadcast %11 : i32 to vector<32x8xi32>
    %13 = arith.xori %10, %12 : vector<32x8xi32>
    %c16_i32 = arith.constant 16 : i32
    %14 = vector.broadcast %c16_i32 : i32 to vector<32x8xi32>
    %15 = arith.shrui %13, %14 : vector<32x8xi32>
    %16 = arith.xori %13, %15 : vector<32x8xi32>
    %c2146121005_i32 = arith.constant 2146121005 : i32
    %17 = vector.broadcast %c2146121005_i32 : i32 to vector<32x8xi32>
    %18 = arith.muli %16, %17 : vector<32x8xi32>
    %c15_i32 = arith.constant 15 : i32
    %19 = vector.broadcast %c15_i32 : i32 to vector<32x8xi32>
    %20 = arith.shrui %18, %19 : vector<32x8xi32>
    %21 = arith.xori %18, %20 : vector<32x8xi32>
    %c-2073254261_i32 = arith.constant -2073254261 : i32
    %22 = vector.broadcast %c-2073254261_i32 : i32 to vector<32x8xi32>
    %23 = arith.muli %21, %22 : vector<32x8xi32>
    %c16_i32_2 = arith.constant 16 : i32
    %24 = vector.broadcast %c16_i32_2 : i32 to vector<32x8xi32>
    %25 = arith.shrui %23, %24 : vector<32x8xi32>
    %26 = arith.xori %23, %25 : vector<32x8xi32>
    %c16777215_i32 = arith.constant 16777215 : i32
    %27 = vector.broadcast %c16777215_i32 : i32 to vector<32x8xi32>
    %28 = arith.andi %26, %27 : vector<32x8xi32>
    %29 = arith.sitofp %28 : vector<32x8xi32> to vector<32x8xf32>
    %cst = arith.constant 5.96046448E-8 : f32
    %30 = vector.broadcast %cst : f32 to vector<32x8xf32>
    %31 = arith.mulf %29, %30 : vector<32x8xf32>
    %cst_3 = arith.constant 9.99999968E-21 : f32
    %32 = vector.broadcast %cst_3 : f32 to vector<32x8xf32>
    %33 = arith.addf %31, %32 : vector<32x8xf32>
    %34 = math.log %33 : vector<32x8xf32>
    %cst_4 = arith.constant 0.000000e+00 : f32
    %35 = vector.broadcast %cst_4 : f32 to vector<32x8xf32>
    %36 = arith.subf %35, %34 : vector<32x8xf32>
    %cst_5 = arith.constant 9.99999968E-21 : f32
    %37 = vector.broadcast %cst_5 : f32 to vector<32x8xf32>
    %38 = arith.addf %36, %37 : vector<32x8xf32>
    %39 = math.log %38 : vector<32x8xf32>
    %cst_6 = arith.constant 0.000000e+00 : f32
    %40 = vector.broadcast %cst_6 : f32 to vector<32x8xf32>
    %41 = arith.subf %40, %39 : vector<32x8xf32>
    %42 = vector.extract_strided_slice %6 {offsets = [0, 0], sizes = [32, 1], strides = [1, 1]} : vector<32x8xi32> to vector<32x1xi32>
    %c-1209970334_i32 = arith.constant -1209970334 : i32
    %43 = arith.addi %2, %c-1209970334_i32 : i32
    %44 = vector.broadcast %43 : i32 to vector<32x1xi32>
    %45 = arith.xori %42, %44 : vector<32x1xi32>
    %c16_i32_7 = arith.constant 16 : i32
    %46 = vector.broadcast %c16_i32_7 : i32 to vector<32x1xi32>
    %47 = arith.shrui %45, %46 : vector<32x1xi32>
    %48 = arith.xori %45, %47 : vector<32x1xi32>
    %c2146121005_i32_8 = arith.constant 2146121005 : i32
    %49 = vector.broadcast %c2146121005_i32_8 : i32 to vector<32x1xi32>
    %50 = arith.muli %48, %49 : vector<32x1xi32>
    %c15_i32_9 = arith.constant 15 : i32
    %51 = vector.broadcast %c15_i32_9 : i32 to vector<32x1xi32>
    %52 = arith.shrui %50, %51 : vector<32x1xi32>
    %53 = arith.xori %50, %52 : vector<32x1xi32>
    %c-2073254261_i32_10 = arith.constant -2073254261 : i32
    %54 = vector.broadcast %c-2073254261_i32_10 : i32 to vector<32x1xi32>
    %55 = arith.muli %53, %54 : vector<32x1xi32>
    %c16_i32_11 = arith.constant 16 : i32
    %56 = vector.broadcast %c16_i32_11 : i32 to vector<32x1xi32>
    %57 = arith.shrui %55, %56 : vector<32x1xi32>
    %58 = arith.xori %55, %57 : vector<32x1xi32>
    %c16777215_i32_12 = arith.constant 16777215 : i32
    %59 = vector.broadcast %c16777215_i32_12 : i32 to vector<32x1xi32>
    %60 = arith.andi %58, %59 : vector<32x1xi32>
    %61 = arith.sitofp %60 : vector<32x1xi32> to vector<32x1xf32>
    %cst_13 = arith.constant 5.96046448E-8 : f32
    %62 = vector.broadcast %cst_13 : f32 to vector<32x1xf32>
    %63 = arith.mulf %61, %62 : vector<32x1xf32>
    %cst_14 = arith.constant 5.000000e-01 : f32
    %64 = vector.broadcast %cst_14 : f32 to vector<32x1xf32>
    %65 = arith.cmpf ole, %63, %64 : vector<32x1xf32>
    %66 = arith.extui %65 : vector<32x1xi1> to vector<32x1xi32>
    %67 = arith.sitofp %66 : vector<32x1xi32> to vector<32x1xf32>
    %68 = vector.broadcast %67 : vector<32x1xf32> to vector<32x8xf32>
    %69 = arith.mulf %41, %68 : vector<32x8xf32>
    %70 = arith.addf %0, %69 : vector<32x8xf32>
    %cst_15 = arith.constant 1.000000e+00 : f32
    %71 = vector.broadcast %cst_15 : f32 to vector<32x8xf32>
    %72 = arith.mulf %70, %71 : vector<32x8xf32>
    %cst_16 = arith.constant dense<0xFF800000> : vector<32xf32>
    %73 = vector.multi_reduction <maximumf>, %72, %cst_16 [1] : vector<32x8xf32> to vector<32xf32>
    %74 = vector.shape_cast %73 : vector<32xf32> to vector<32x1xf32>
    %75 = tpu.iota {dimensions = array<i32: 1>} : vector<32x8xi32>
    %76 = vector.broadcast %74 : vector<32x1xf32> to vector<32x8xf32>
    %77 = arith.cmpf oge, %72, %76 : vector<32x8xf32>
    %c8_i32_17 = arith.constant 8 : i32
    %78 = vector.broadcast %c8_i32_17 : i32 to vector<32x8xi32>
    %79 = arith.select %77, %75, %78 : vector<32x8xi1>, vector<32x8xi32>
    %cst_18 = arith.constant dense<2147483647> : vector<32xi32>
    %80 = vector.multi_reduction <minsi>, %79, %cst_18 [1] : vector<32x8xi32> to vector<32xi32>
    %81 = vector.shape_cast %80 : vector<32xi32> to vector<32x1xi32>
    %82 = vector.broadcast %81 : vector<32x1xi32> to vector<32x8xi32>
    %83 = arith.cmpi eq, %75, %82 : vector<32x8xi32>
    %84 = arith.extui %83 : vector<32x8xi1> to vector<32x8xi32>
    %85 = arith.sitofp %84 : vector<32x8xi32> to vector<32x8xf32>
    %86 = vector.broadcast %74 : vector<32x1xf32> to vector<32x8xf32>
    %87 = arith.subf %72, %86 : vector<32x8xf32>
    %88 = math.exp %87 : vector<32x8xf32>
    %cst_19 = arith.constant dense<0.000000e+00> : vector<32xf32>
    %89 = vector.multi_reduction <add>, %88, %cst_19 [1] : vector<32x8xf32> to vector<32xf32>
    %90 = vector.shape_cast %89 : vector<32xf32> to vector<32x1xf32>
    %91 = vector.broadcast %90 : vector<32x1xf32> to vector<32x8xf32>
    %92 = arith.divf %88, %91 : vector<32x8xf32>
    %93 = arith.subf %85, %92 : vector<32x8xf32>
    %94 = arith.addf %93, %92 : vector<32x8xf32>
    %c0_20 = arith.constant 0 : index
    %c0_21 = arith.constant 0 : index
    %95 = vector.load %arg3[%c0_20, %c0_21] : memref<32x8xf32, #tpu.memory_space<vmem>>, vector<32x8xf32>
    tpu.vector_store %arg3[%c0_20, %c0_21], %94 {strides = array<i32>} : memref<32x8xf32, #tpu.memory_space<vmem>>, vector<32x8xf32>,
    return
  }
  func.func @transform_0(%arg0: i32, %arg1: memref<1xi32, #tpu.memory_space<smem>>) -> (i32, i32) {
    %c0_i32 = arith.constant 0 : i32
    %c0_i32_0 = arith.constant 0 : i32
    return %arg0, %c0_i32 : i32, i32
  }
  func.func @transform_1(%arg0: i32, %arg1: memref<1xi32, #tpu.memory_space<smem>>) -> (i32, i32) {
    %c0_i32 = arith.constant 0 : i32
    %c0_i32_0 = arith.constant 0 : i32
    return %arg0, %c0_i32 : i32, i32
  }
}

</mosaic_0001>

<llo_original>
// kernel: tpu_custom_call.1
$region0: #{tpu_custom_call.1}
  #allocation0 [shape = 'u32[]', space=smem, size = 0x4, offset = 0x4, fixed_abs, tag = 'smem constant byte address 0x4 - core index']
  #allocation1 [shape = 'u32[144,128]{1,0:T(1,128)}', space=vmem, size = 0x12000, scoped, tag = 'internal scratch']
  #allocation2 [shape = 's32[1]{0}', space=sflag, size = 0x4, scoped, tag = 'scoped memory for tpu_custom_call.1']
  #allocation3 [shape = 's32[1]{0:T(128)S(6)}', space=smem, size = 0x200, scoped, tag = 'prefetched SMEM operand 0']
  %s0 = inlined_call_operand.<no memory space> [shape: s32[1], index: 0, kind: input, shape index: {}]
  %s1 = inlined_call_operand.vmem [shape: f32[32,8], index: 1, kind: input, shape index: {}]
  %s2 = inlined_call_operand.vmem [shape: f32[32,8], index: 2, kind: output, shape index: {}]
  %s3 = sld [smem:[#allocation0]]
  $region14: #{tpu_custom_call.1} parent=0
    _
  %s5 = ssub.s32 1, %s3
  %s6 = scalar_select 0, %s5, %s3
  %7 = sst [smem:[#allocation3]] %s0
  // Predicated region
  $region2: #{tpu_custom_call.1} parent=0 // pred_check
    _
  $region3: #{tpu_custom_call.1} parent=0 // pred_check_branch
    %9 = sbr.rel (0) target = $region5
  $region4: #{tpu_custom_call.1} parent=0 // pred_region
    _
  $region5: #{tpu_custom_call.1} parent=0 // pred_fallthru
    _
  %v10 = vld [vmem:[%s1] sm:$0xff]
  %v11 = vld [vmem:[%s1 + $0x8] sm:$0xff]
  %v12 = vld [vmem:[%s1 + $0x10] sm:$0xff]
  %v13 = vld [vmem:[%s1 + $0x18] sm:$0xff]
  %s14 = sld [smem:[#allocation3]]
  %s15 = smul.u32 %s14, 2654435769
  %s16 = smul.u32 0, 32
  %v17 = vlaneseq
  %v18 = vshrl.u32 %v17, 7
  %v19 = vadd.s32 %v18, 8
  %v20 = vadd.s32 %v18, 16
  %v21 = vadd.s32 %v18, 24
  %v22 = vstv %s16
  %v23 = vadd.s32 %v18, %v22
  %v24 = vadd.s32 %v19, %v22
  %v25 = vadd.s32 %v20, %v22
  %v26 = vadd.s32 %v21, %v22
  %v27 = vlaneseq
  %v28 = vand.u32 %v27, 127
  %v29 = vmul.u32 %v23, 8
  %v30 = vmul.u32 %v24, 8
  %v31 = vmul.u32 %v25, 8
  %v32 = vmul.u32 %v26, 8
  %v33 = vadd.s32 %v29, %v28
  %v34 = vadd.s32 %v30, %v28
  %v35 = vadd.s32 %v31, %v28
  %v36 = vadd.s32 %v32, %v28
  %s37 = sadd.s32 %s15, 608135816
  %v38 = vstv %s37
  %v39 = vxor.u32 %v33, %v38
  %v40 = vxor.u32 %v34, %v38
  %v41 = vxor.u32 %v35, %v38
  %v42 = vxor.u32 %v36, %v38
  %v43 = vshrl.u32 %v39, 16
  %v44 = vshrl.u32 %v40, 16
  %v45 = vshrl.u32 %v41, 16
  %v46 = vshrl.u32 %v42, 16
  %v47 = vxor.u32 %v39, %v43
  %v48 = vxor.u32 %v40, %v44
  %v49 = vxor.u32 %v41, %v45
  %v50 = vxor.u32 %v42, %v46
  %v51 = vmul.u32 %v47, 2146121005
  %v52 = vmul.u32 %v48, 2146121005
  %v53 = vmul.u32 %v49, 2146121005
  %v54 = vmul.u32 %v50, 2146121005
  %v55 = vshrl.u32 %v51, 15
  %v56 = vshrl.u32 %v52, 15
  %v57 = vshrl.u32 %v53, 15
  %v58 = vshrl.u32 %v54, 15
  %v59 = vxor.u32 %v51, %v55
  %v60 = vxor.u32 %v52, %v56
  %v61 = vxor.u32 %v53, %v57
  %v62 = vxor.u32 %v54, %v58
  %v63 = vmul.u32 %v59, 2221713035
  %v64 = vmul.u32 %v60, 2221713035
  %v65 = vmul.u32 %v61, 2221713035
  %v66 = vmul.u32 %v62, 2221713035
  %v67 = vshrl.u32 %v63, 16
  %v68 = vshrl.u32 %v64, 16
  %v69 = vshrl.u32 %v65, 16
  %v70 = vshrl.u32 %v66, 16
  %v71 = vxor.u32 %v63, %v67
  %v72 = vxor.u32 %v64, %v68
  %v73 = vxor.u32 %v65, %v69
  %v74 = vxor.u32 %v66, %v70
  %v75 = vand.u32 %v71, 16777215
  %v76 = vand.u32 %v72, 16777215
  %v77 = vand.u32 %v73, 16777215
  %v78 = vand.u32 %v74, 16777215
  %v79 = vcvt.s32.f32 %v75
  %v80 = vcvt.s32.f32 %v76
  %v81 = vcvt.s32.f32 %v77
  %v82 = vcvt.s32.f32 %v78
  %v83 = vmul.f32 %v79, 5.9604645e-08
  %v84 = vmul.f32 %v80, 5.9604645e-08
  %v85 = vmul.f32 %v81, 5.9604645e-08
  %v86 = vmul.f32 %v82, 5.9604645e-08
  %v87 = vadd.f32 %v83, 1e-20
  %v88 = vadd.f32 %v84, 1e-20
  %v89 = vadd.f32 %v85, 1e-20
  %v90 = vadd.f32 %v86, 1e-20
  %v91 = vlog2.pop %v87
  %v92 = vmul.f32 %v91, 0.6931472
  %v93 = vlog2.pop %v88
  %v94 = vmul.f32 %v93, 0.6931472
  %v95 = vlog2.pop %v89
  %v96 = vmul.f32 %v95, 0.6931472
  %v97 = vlog2.pop %v90
  %v98 = vmul.f32 %v97, 0.6931472
  %v99 = vsub.f32 0.0, %v92
  %v100 = vsub.f32 0.0, %v94
  %v101 = vsub.f32 0.0, %v96
  %v102 = vsub.f32 0.0, %v98
  %v103 = vadd.f32 %v99, 1e-20
  %v104 = vadd.f32 %v100, 1e-20
  %v105 = vadd.f32 %v101, 1e-20
  %v106 = vadd.f32 %v102, 1e-20
  %v107 = vlog2.pop %v103
  %v108 = vmul.f32 %v107, 0.6931472
  %v109 = vlog2.pop %v104
  %v110 = vmul.f32 %v109, 0.6931472
  %v111 = vlog2.pop %v105
  %v112 = vmul.f32 %v111, 0.6931472
  %v113 = vlog2.pop %v106
  %v114 = vmul.f32 %v113, 0.6931472
  %v115 = vsub.f32 0.0, %v108
  %v116 = vsub.f32 0.0, %v110
  %v117 = vsub.f32 0.0, %v112
  %v118 = vsub.f32 0.0, %v114
  %s119 = sadd.s32 %s15, 3084996962
  %v120 = vstv %s119
  %v121 = vxor.u32 %v23, %v120
  %v122 = vxor.u32 %v24, %v120
  %v123 = vxor.u32 %v25, %v120
  %v124 = vxor.u32 %v26, %v120
  %v125 = vshrl.u32 %v121, 16
  %v126 = vshrl.u32 %v122, 16
  %v127 = vshrl.u32 %v123, 16
  %v128 = vshrl.u32 %v124, 16
  %v129 = vxor.u32 %v121, %v125
  %v130 = vxor.u32 %v122, %v126
  %v131 = vxor.u32 %v123, %v127
  %v132 = vxor.u32 %v124, %v128
  %v133 = vmul.u32 %v129, 2146121005
  %v134 = vmul.u32 %v130, 2146121005
  %v135 = vmul.u32 %v131, 2146121005
  %v136 = vmul.u32 %v132, 2146121005
  %v137 = vshrl.u32 %v133, 15
  %v138 = vshrl.u32 %v134, 15
  %v139 = vshrl.u32 %v135, 15
  %v140 = vshrl.u32 %v136, 15
  %v141 = vxor.u32 %v133, %v137
  %v142 = vxor.u32 %v134, %v138
  %v143 = vxor.u32 %v135, %v139
  %v144 = vxor.u32 %v136, %v140
  %v145 = vmul.u32 %v141, 2221713035
  %v146 = vmul.u32 %v142, 2221713035
  %v147 = vmul.u32 %v143, 2221713035
  %v148 = vmul.u32 %v144, 2221713035
  %v149 = vshrl.u32 %v145, 16
  %v150 = vshrl.u32 %v146, 16
  %v151 = vshrl.u32 %v147, 16
  %v152 = vshrl.u32 %v148, 16
  %v153 = vxor.u32 %v145, %v149
  %v154 = vxor.u32 %v146, %v150
  %v155 = vxor.u32 %v147, %v151
  %v156 = vxor.u32 %v148, %v152
  %v157 = vand.u32 %v153, 16777215
  %v158 = vand.u32 %v154, 16777215
  %v159 = vand.u32 %v155, 16777215
  %v160 = vand.u32 %v156, 16777215
  %v161 = vcvt.s32.f32 %v157
  %v162 = vcvt.s32.f32 %v158
  %v163 = vcvt.s32.f32 %v159
  %v164 = vcvt.s32.f32 %v160
  %v165 = vmul.f32 %v161, 5.9604645e-08
  %v166 = vmul.f32 %v162, 5.9604645e-08
  %v167 = vmul.f32 %v163, 5.9604645e-08
  %v168 = vmul.f32 %v164, 5.9604645e-08
  %vm169 = vcmp.le.f32.partialorder %v165, 0.5
  %vm170 = vcmp.le.f32.partialorder %v166, 0.5
  %vm171 = vcmp.le.f32.partialorder %v167, 0.5
  %vm172 = vcmp.le.f32.partialorder %v168, 0.5
  %v173 = vsel %vm169, 1, 0
  %v174 = vsel %vm170, 1, 0
  %v175 = vsel %vm171, 1, 0
  %v176 = vsel %vm172, 1, 0
  %v177 = vcvt.s32.f32 %v173
  %v178 = vcvt.s32.f32 %v174
  %v179 = vcvt.s32.f32 %v175
  %v180 = vcvt.s32.f32 %v176
  %v181 = vmul.f32 %v115, %v177
  %v182 = vmul.f32 %v116, %v178
  %v183 = vmul.f32 %v117, %v179
  %v184 = vmul.f32 %v118, %v180
  %v185 = vadd.f32 %v10, %v181
  %v186 = vadd.f32 %v11, %v182
  %v187 = vadd.f32 %v12, %v183
  %v188 = vadd.f32 %v13, %v184
  %vm189 = vcmask 64512
  %v190 = vsel %vm189, %v185, -inf
  %191 = vmax.xlane.f32.xlu0 %v190
  %v192 = vpop.xlane.xlu0 %191
  %v193 = vsel %vm189, %v186, -inf
  %194 = vmax.xlane.f32.xlu0 %v193
  %v195 = vpop.xlane.xlu0 %194
  %v196 = vsel %vm189, %v187, -inf
  %197 = vmax.xlane.f32.xlu0 %v196
  %v198 = vpop.xlane.xlu0 %197
  %v199 = vsel %vm189, %v188, -inf
  %200 = vmax.xlane.f32.xlu0 %v199
  %v201 = vpop.xlane.xlu0 %200
  %vm202 = vcmp.ge.f32.partialorder %v185, %v192
  %vm203 = vcmp.ge.f32.partialorder %v186, %v195
  %vm204 = vcmp.ge.f32.partialorder %v187, %v198
  %vm205 = vcmp.ge.f32.partialorder %v188, %v201
  %v206 = vsel %vm202, %v28, 8
  %v207 = vsel %vm203, %v28, 8
  %v208 = vsel %vm204, %v28, 8
  %v209 = vsel %vm205, %v28, 8
  %v210 = vsel %vm189, %v206, 2147483647
  %v211 = vand.u32 %v210, 65535
  %v212 = vshra.s32 %v210, 16
  %v213 = vcvt.s32.f32 %v211
  %v214 = vcvt.s32.f32 %v212
  %215 = vmin.xlane.f32.xlu0 %v214
  %v216 = vpop.xlane.xlu0 %215
  %vm217 = vcmp.eq.f32.partialorder %v214, %v216
  %v218 = vsel %vm217, %v213, inf
  %219 = vmin.xlane.f32.xlu0 %v218
  %v220 = vpop.xlane.xlu0 %219
  %v221 = vcvt.f32.s32 %v220
  %v222 = vcvt.f32.s32 %v216
  %v223 = vshll.u32 %v222, 16
  %v224 = vadd.s32 %v223, %v221
  %v225 = vsel %vm189, %v207, 2147483647
  %v226 = vand.u32 %v225, 65535
  %v227 = vshra.s32 %v225, 16
  %v228 = vcvt.s32.f32 %v226
  %v229 = vcvt.s32.f32 %v227
  %230 = vmin.xlane.f32.xlu0 %v229
  %v231 = vpop.xlane.xlu0 %230
  %vm232 = vcmp.eq.f32.partialorder %v229, %v231
  %v233 = vsel %vm232, %v228, inf
  %234 = vmin.xlane.f32.xlu0 %v233
  %v235 = vpop.xlane.xlu0 %234
  %v236 = vcvt.f32.s32 %v235
  %v237 = vcvt.f32.s32 %v231
  %v238 = vshll.u32 %v237, 16
  %v239 = vadd.s32 %v238, %v236
  %v240 = vsel %vm189, %v208, 2147483647
  %v241 = vand.u32 %v240, 65535
  %v242 = vshra.s32 %v240, 16
  %v243 = vcvt.s32.f32 %v241
  %v244 = vcvt.s32.f32 %v242
  %245 = vmin.xlane.f32.xlu0 %v244
  %v246 = vpop.xlane.xlu0 %245
  %vm247 = vcmp.eq.f32.partialorder %v244, %v246
  %v248 = vsel %vm247, %v243, inf
  %249 = vmin.xlane.f32.xlu0 %v248
  %v250 = vpop.xlane.xlu0 %249
  %v251 = vcvt.f32.s32 %v250
  %v252 = vcvt.f32.s32 %v246
  %v253 = vshll.u32 %v252, 16
  %v254 = vadd.s32 %v253, %v251
  %v255 = vsel %vm189, %v209, 2147483647
  %v256 = vand.u32 %v255, 65535
  %v257 = vshra.s32 %v255, 16
  %v258 = vcvt.s32.f32 %v256
  %v259 = vcvt.s32.f32 %v257
  %260 = vmin.xlane.f32.xlu0 %v259
  %v261 = vpop.xlane.xlu0 %260
  %vm262 = vcmp.eq.f32.partialorder %v259, %v261
  %v263 = vsel %vm262, %v258, inf
  %264 = vmin.xlane.f32.xlu0 %v263
  %v265 = vpop.xlane.xlu0 %264
  %v266 = vcvt.f32.s32 %v265
  %v267 = vcvt.f32.s32 %v261
  %v268 = vshll.u32 %v267, 16
  %v269 = vadd.s32 %v268, %v266
  %vm270 = vcmp.eq.s32.totalorder %v28, %v224
  %vm271 = vcmp.eq.s32.totalorder %v28, %v239
  %vm272 = vcmp.eq.s32.totalorder %v28, %v254
  %vm273 = vcmp.eq.s32.totalorder %v28, %v269
  %v274 = vsel %vm270, 1, 0
  %v275 = vsel %vm271, 1, 0
  %v276 = vsel %vm272, 1, 0
  %v277 = vsel %vm273, 1, 0
  %v278 = vcvt.s32.f32 %v274
  %v279 = vcvt.s32.f32 %v275
  %v280 = vcvt.s32.f32 %v276
  %v281 = vcvt.s32.f32 %v277
  %v282 = vsub.f32 %v185, %v192
  %v283 = vsub.f32 %v186, %v195
  %v284 = vsub.f32 %v187, %v198
  %v285 = vsub.f32 %v188, %v201
  %v286 = vmul.f32 %v282, 1.442695
  %v287 = vpow.pop %v286
  %v288 = vmul.f32 %v283, 1.442695
  %v289 = vpow.pop %v288
  %v290 = vmul.f32 %v284, 1.442695
  %v291 = vpow.pop %v290
  %v292 = vmul.f32 %v285, 1.442695
  %v293 = vpow.pop %v292
  %v294 = vsel %vm189, %v287, 0.0
  %295 = vadd.xlane.f32.xlu0 %v294
  %v296 = vpop.xlane.xlu0 %295
  %v297 = vsel %vm189, %v289, 0.0
  %298 = vadd.xlane.f32.xlu0 %v297
  %v299 = vpop.xlane.xlu0 %298
  %v300 = vsel %vm189, %v291, 0.0
  %301 = vadd.xlane.f32.xlu0 %v300
  %v302 = vpop.xlane.xlu0 %301
  %v303 = vsel %vm189, %v293, 0.0
  %304 = vadd.xlane.f32.xlu0 %v303
  %v305 = vpop.xlane.xlu0 %304
  %v306 = vrcp.pop %v296
  %v307 = vmul.f32 %v287, %v306
  %v308 = vrcp.pop %v299
  %v309 = vmul.f32 %v289, %v308
  %v310 = vrcp.pop %v302
  %v311 = vmul.f32 %v291, %v310
  %v312 = vrcp.pop %v305
  %v313 = vmul.f32 %v293, %v312
  %v314 = vsub.f32 %v278, %v307
  %v315 = vsub.f32 %v279, %v309
  %v316 = vsub.f32 %v280, %v311
  %v317 = vsub.f32 %v281, %v313
  %v318 = vadd.f32 %v314, %v307
  %v319 = vadd.f32 %v315, %v309
  %v320 = vadd.f32 %v316, %v311
  %v321 = vadd.f32 %v317, %v313
  %322 = vst.msk [vmem:[%s2] sm:$0xff] %vm189, %v318
  %323 = vst.msk [vmem:[%s2 + $0x8] sm:$0xff] %vm189, %v319
  %324 = vst.msk [vmem:[%s2 + $0x10] sm:$0xff] %vm189, %v320
  %325 = vst.msk [vmem:[%s2 + $0x18] sm:$0xff] %vm189, %v321
  // Predicated region
  $region6: #{tpu_custom_call.1} parent=0 // pred_check
    _
  $region7: #{tpu_custom_call.1} parent=0 // pred_check_branch
    %327 = sbr.rel (0) target = $region9
  $region8: #{tpu_custom_call.1} parent=0 // pred_region
    _
  $region9: #{tpu_custom_call.1} parent=0 // pred_fallthru
    _
  // Predicated region
  $region10: #{tpu_custom_call.1} parent=0 // pred_check
    _
  $region11: #{tpu_custom_call.1} parent=0 // pred_check_branch
    %329 = sbr.rel (0) target = $region13
  $region12: #{tpu_custom_call.1} parent=0 // pred_region
    _
  $region13: #{tpu_custom_call.1} parent=0 // pred_fallthru
    _

</llo_original>
